<compile_context>
chip_gen: v5e
topology: v5e:2x2
jax: 0.10.0
libtpu: 0.0.40
codegen_flags: <defaults>
</compile_context>

<pallas_src>
import functools

import jax
import jax.numpy as jnp
from jax import lax
from jax.experimental import pallas as pl
from jax.experimental.pallas import tpu as pltpu

LANE = 128
SUBLANE = 8
NEG_BIG = -1e30  # large negative instead of -inf (avoids inf arithmetic)


def _round_up(n, m):
    return ((n + m - 1) // m) * m


def actor_critic_kernel(x_ref, w1_ref, b1_ref, w2_ref, b2_ref, wh_ref, bh_ref,
                        out_ref, *, action_dim):
    """One batch tile. All activations are (features, B_tile): batch on lanes.

    x_ref  : (D_pad, Bt)        padded state, transposed
    w1_ref : (64, D_pad)        b1_ref: (64, 1)
    w2_ref : (32, 64)           b2_ref: (32, 1)
    wh_ref : (H_pad, 32)        bh_ref: (H_pad, 1)   fused actor+critic head
    out_ref: (H_pad, Bt)        rows [0,action_dim) = probs, row action_dim = value
    """
    x = x_ref[...]

    # features = Tanh(Linear(state_dim -> 64)) ; Tanh(Linear(64 -> 32))
    h1 = jnp.tanh(
        jnp.dot(w1_ref[...], x, preferred_element_type=jnp.float32,
                precision=lax.Precision.HIGHEST) + b1_ref[...]
    )
    h2 = jnp.tanh(
        jnp.dot(w2_ref[...], h1, preferred_element_type=jnp.float32,
                precision=lax.Precision.HIGHEST) + b2_ref[...]
    )

    # Fused head: one MXU pass produces actor logits AND critic value.
    head = jnp.dot(wh_ref[...], h2, preferred_element_type=jnp.float32,
                   precision=lax.Precision.HIGHEST) + bh_ref[...]

    # Softmax over the action rows only (sublane axis); padded rows masked out.
    row = lax.broadcasted_iota(jnp.int32, head.shape, 0)
    is_action = row < action_dim
    logits = jnp.where(is_action, head, NEG_BIG)
    m = jnp.max(logits, axis=0, keepdims=True)
    e = jnp.exp(logits - m)                       # masked rows -> 0
    denom = jnp.sum(e, axis=0, keepdims=True)
    probs = e / denom                             # exact divide: probs sum to 1

    # rows [0, action_dim): softmax probs; row action_dim: raw critic value; rest: 0.
    out_ref[...] = jnp.where(row == action_dim, head, probs)


def actor_critic_forward(state, params, *, batch_tile=512):
    """ActorCritic forward in a single Pallas call.

    state : (B, state_dim) float32
    params: dict with w1 (S,64), b1 (64,), w2 (64,32), b2 (32,),
            wa (32,A), ba (A,), wc (32,1), bc (1,)
    Returns (action_probs (B, action_dim), value (B, 1)).
    """
    B, state_dim = state.shape
    action_dim = params["wa"].shape[1]

    d_pad = _round_up(state_dim, SUBLANE)        # padded input-feature rows
    h_pad = _round_up(action_dim + 1, SUBLANE)   # padded fused-head rows

    # Batch tile: multiple of 128 lanes; pad B so it divides evenly.
    bt = min(batch_tile, _round_up(B, LANE))
    b_pad = _round_up(B, bt)

    # ---- one-time operand prep (batch-on-lanes, weights pre-transposed) ----
    x_t = jnp.zeros((d_pad, b_pad), jnp.float32).at[:state_dim, :B].set(state.T)

    w1t = jnp.zeros((64, d_pad), jnp.float32).at[:, :state_dim].set(params["w1"].T)
    b1t = params["b1"].reshape(64, 1).astype(jnp.float32)
    w2t = params["w2"].T.astype(jnp.float32)                      # (32, 64)
    b2t = params["b2"].reshape(32, 1).astype(jnp.float32)

    # Fused actor+critic head: columns [wa | wc] -> transpose -> pad rows to 8.
    wh = jnp.concatenate([params["wa"], params["wc"]], axis=1).T   # (A+1, 32)
    bh = jnp.concatenate([params["ba"], params["bc"]], axis=0).reshape(-1, 1)
    wht = jnp.zeros((h_pad, 32), jnp.float32).at[: action_dim + 1, :].set(wh)
    bht = jnp.zeros((h_pad, 1), jnp.float32).at[: action_dim + 1, :].set(bh)

    grid = (b_pad // bt,)

    def resident(shape):
        # VMEM-resident operand: same block for every grid step.
        return pl.BlockSpec(shape, lambda i, _n=len(shape): (0,) * _n)

    in_specs = [
        pl.BlockSpec((d_pad, bt), lambda i: (0, i)),   # state tile (lane-dense)
        resident(w1t.shape), resident(b1t.shape),
        resident(w2t.shape), resident(b2t.shape),
        resident(wht.shape), resident(bht.shape),
    ]
    out_spec = pl.BlockSpec((h_pad, bt), lambda i: (0, i))

    kernel = functools.partial(actor_critic_kernel, action_dim=action_dim)

    head_out = pl.pallas_call(
        kernel,
        grid=grid,
        in_specs=in_specs,
        out_specs=out_spec,
        out_shape=jax.ShapeDtypeStruct((h_pad, b_pad), jnp.float32),
        compiler_params=pltpu.CompilerParams(
            dimension_semantics=("parallel",),
        ),
    )(x_t, w1t, b1t, w2t, b2t, wht, bht)

    probs = head_out[:action_dim, :B].T                    # (B, action_dim)
    value = head_out[action_dim:action_dim + 1, :B].T      # (B, 1)
    return probs, value


def init_params(key, state_dim, action_dim):
    """Deterministic PyTorch-style (uniform +/- 1/sqrt(fan_in)) init."""
    def linear(k, fan_in, fan_out):
        kw, kb = jax.random.split(k)
        bound = 1.0 / jnp.sqrt(fan_in)
        w = jax.random.uniform(kw, (fan_in, fan_out), jnp.float32, -bound, bound)
        b = jax.random.uniform(kb, (fan_out,), jnp.float32, -bound, bound)
        return w, b

    k1, k2, k3, k4 = jax.random.split(key, 4)
    w1, b1 = linear(k1, state_dim, 64)
    w2, b2 = linear(k2, 64, 32)
    wa, ba = linear(k3, 32, action_dim)
    wc, bc = linear(k4, 32, 1)
    return dict(w1=w1, b1=b1, w2=w2, b2=b2, wa=wa, ba=ba, wc=wc, bc=bc)


def reference_forward(state, p):
    h1 = jnp.tanh(state @ p["w1"] + p["b1"])
    h2 = jnp.tanh(h1 @ p["w2"] + p["b2"])
    logits = h2 @ p["wa"] + p["ba"]
    probs = jax.nn.softmax(logits, axis=-1)
    value = h2 @ p["wc"] + p["bc"]
    return probs, value


if __name__ == "__main__":
    # CartPole-like dims: state_dim=4, action_dim=2.
    STATE_DIM, ACTION_DIM = 4, 2
    key = jax.random.PRNGKey(0)
    k_in, k_param, k_big = jax.random.split(key, 3)
    params = init_params(k_param, STATE_DIM, ACTION_DIM)

    # --- small batch (B=2), single grid step with padding ---
    B = 2
    state = jax.random.normal(k_in, (B, STATE_DIM), dtype=jnp.float32)
    probs, value = actor_critic_forward(state, params)
    jax.block_until_ready((probs, value))

    ref_probs, ref_value = reference_forward(state, params)
    assert probs.shape == (B, ACTION_DIM) and value.shape == (B, 1)
    assert jnp.allclose(probs, ref_probs, atol=1e-3, rtol=1e-3)
    assert jnp.allclose(value, ref_value, atol=1e-3, rtol=1e-3)
    assert jnp.allclose(jnp.sum(probs, axis=-1), 1.0, atol=1e-5)

    # --- larger ragged batch, multi-step grid (exercises tiling + padding) ---
    B2 = 300
    state2 = jax.random.normal(k_big, (B2, STATE_DIM), dtype=jnp.float32)
    probs2, value2 = actor_critic_forward(state2, params, batch_tile=128)
    jax.block_until_ready((probs2, value2))
    ref_probs2, ref_value2 = reference_forward(state2, params)
    assert probs2.shape == (B2, ACTION_DIM) and value2.shape == (B2, 1)
    assert jnp.allclose(probs2, ref_probs2, atol=1e-3, rtol=1e-3)
    assert jnp.allclose(value2, ref_value2, atol=1e-3, rtol=1e-3)
    assert jnp.allclose(jnp.sum(probs2, axis=-1), 1.0, atol=1e-5)

    # TODO(synk): get_action's Categorical sampling / log_prob stays host-side
    # (not part of the module's forward pass).
    print("KERNEL_OK")
</pallas_src>

<mosaic_0001>
module attributes {stable_mosaic.version = 11 : i64} {
  func.func @actor_critic_kernel(%arg0: i32, %arg1: memref<8x128xf32, #tpu.memory_space<vmem>>, %arg2: memref<64x8xf32, #tpu.memory_space<vmem>>, %arg3: memref<64x1xf32, #tpu.memory_space<vmem>>, %arg4: memref<32x64xf32, #tpu.memory_space<vmem>>, %arg5: memref<32x1xf32, #tpu.memory_space<vmem>>, %arg6: memref<8x32xf32, #tpu.memory_space<vmem>>, %arg7: memref<8x1xf32, #tpu.memory_space<vmem>>, %arg8: memref<8x128xf32, #tpu.memory_space<vmem>>) attributes {dimension_semantics = [#tpu.dimension_semantics<parallel>], iteration_bounds = array<i64: 1>, scalar_prefetch = 0 : i64, scratch_operands = 0 : i64, tpu.core_type = #tpu.core_type<tc>, window_params = [{transform_indices = @transform_0, window_bounds = array<i64: 8, 128>}, {pipeline_mode = #tpu.pipeline_mode<synchronous>, transform_indices = @transform_1, window_bounds = array<i64: 64, 8>}, {pipeline_mode = #tpu.pipeline_mode<synchronous>, transform_indices = @transform_2, window_bounds = array<i64: 64, 1>}, {pipeline_mode = #tpu.pipeline_mode<synchronous>, transform_indices = @transform_3, window_bounds = array<i64: 32, 64>}, {pipeline_mode = #tpu.pipeline_mode<synchronous>, transform_indices = @transform_4, window_bounds = array<i64: 32, 1>}, {pipeline_mode = #tpu.pipeline_mode<synchronous>, transform_indices = @transform_5, window_bounds = array<i64: 8, 32>}, {pipeline_mode = #tpu.pipeline_mode<synchronous>, transform_indices = @transform_6, window_bounds = array<i64: 8, 1>}, {transform_indices = @transform_7, window_bounds = array<i64: 8, 128>}]} {
    %c0 = arith.constant 0 : index
    %c0_0 = arith.constant 0 : index
    %0 = vector.load %arg1[%c0, %c0_0] : memref<8x128xf32, #tpu.memory_space<vmem>>, vector<8x128xf32>
    %c0_1 = arith.constant 0 : index
    %c0_2 = arith.constant 0 : index
    %1 = vector.load %arg2[%c0_1, %c0_2] : memref<64x8xf32, #tpu.memory_space<vmem>>, vector<64x8xf32>
    %cst = arith.constant dense<0.000000e+00> : vector<64x128xf32>
    %2 = tpu.matmul %1, %0, %cst {dimension_numbers = #tpu.dot_dimension_numbers<[1], [0], [0], [1], [0, 0, 1, 1], [], []>, precision = #tpu.contract_precision<fp32>} : vector<64x8xf32>, vector<8x128xf32>, vector<64x128xf32> -> vector<64x128xf32>
    %c0_3 = arith.constant 0 : index
    %c0_4 = arith.constant 0 : index
    %3 = vector.load %arg3[%c0_3, %c0_4] : memref<64x1xf32, #tpu.memory_space<vmem>>, vector<64x1xf32>
    %4 = vector.broadcast %3 : vector<64x1xf32> to vector<64x128xf32>
    %5 = arith.addf %2, %4 : vector<64x128xf32>
    %6 = math.tanh %5 : vector<64x128xf32>
    %c0_5 = arith.constant 0 : index
    %c0_6 = arith.constant 0 : index
    %7 = vector.load %arg4[%c0_5, %c0_6] : memref<32x64xf32, #tpu.memory_space<vmem>>, vector<32x64xf32>
    %cst_7 = arith.constant dense<0.000000e+00> : vector<32x128xf32>
    %8 = tpu.matmul %7, %6, %cst_7 {dimension_numbers = #tpu.dot_dimension_numbers<[1], [0], [0], [1], [0, 0, 1, 1], [], []>, precision = #tpu.contract_precision<fp32>} : vector<32x64xf32>, vector<64x128xf32>, vector<32x128xf32> -> vector<32x128xf32>
    %c0_8 = arith.constant 0 : index
    %c0_9 = arith.constant 0 : index
    %9 = vector.load %arg5[%c0_8, %c0_9] : memref<32x1xf32, #tpu.memory_space<vmem>>, vector<32x1xf32>
    %10 = vector.broadcast %9 : vector<32x1xf32> to vector<32x128xf32>
    %11 = arith.addf %8, %10 : vector<32x128xf32>
    %12 = math.tanh %11 : vector<32x128xf32>
    %c0_10 = arith.constant 0 : index
    %c0_11 = arith.constant 0 : index
    %13 = vector.load %arg6[%c0_10, %c0_11] : memref<8x32xf32, #tpu.memory_space<vmem>>, vector<8x32xf32>
    %cst_12 = arith.constant dense<0.000000e+00> : vector<8x128xf32>
    %14 = tpu.matmul %13, %12, %cst_12 {dimension_numbers = #tpu.dot_dimension_numbers<[1], [0], [0], [1], [0, 0, 1, 1], [], []>, precision = #tpu.contract_precision<fp32>} : vector<8x32xf32>, vector<32x128xf32>, vector<8x128xf32> -> vector<8x128xf32>
    %c0_13 = arith.constant 0 : index
    %c0_14 = arith.constant 0 : index
    %15 = vector.load %arg7[%c0_13, %c0_14] : memref<8x1xf32, #tpu.memory_space<vmem>>, vector<8x1xf32>
    %16 = vector.broadcast %15 : vector<8x1xf32> to vector<8x128xf32>
    %17 = arith.addf %14, %16 : vector<8x128xf32>
    %18 = tpu.iota {dimensions = array<i32: 0>} : vector<8x128xi32>
    %c2_i32 = arith.constant 2 : i32
    %19 = vector.broadcast %c2_i32 : i32 to vector<8x128xi32>
    %20 = arith.cmpi slt, %18, %19 : vector<8x128xi32>
    %cst_15 = arith.constant -1.000000e+30 : f32
    %21 = vector.broadcast %cst_15 : f32 to vector<8x128xf32>
    %22 = arith.select %20, %17, %21 : vector<8x128xi1>, vector<8x128xf32>
    %cst_16 = arith.constant dense<0xFF800000> : vector<128xf32>
    %23 = vector.multi_reduction <maximumf>, %22, %cst_16 [0] : vector<8x128xf32> to vector<128xf32>
    %24 = vector.shape_cast %23 : vector<128xf32> to vector<1x128xf32>
    %25 = vector.broadcast %24 : vector<1x128xf32> to vector<8x128xf32>
    %26 = arith.subf %22, %25 : vector<8x128xf32>
    %27 = math.exp %26 : vector<8x128xf32>
    %cst_17 = arith.constant dense<0.000000e+00> : vector<128xf32>
    %28 = vector.multi_reduction <add>, %27, %cst_17 [0] : vector<8x128xf32> to vector<128xf32>
    %29 = vector.shape_cast %28 : vector<128xf32> to vector<1x128xf32>
    %30 = vector.broadcast %29 : vector<1x128xf32> to vector<8x128xf32>
    %31 = arith.divf %27, %30 : vector<8x128xf32>
    %c2_i32_18 = arith.constant 2 : i32
    %32 = vector.broadcast %c2_i32_18 : i32 to vector<8x128xi32>
    %33 = arith.cmpi eq, %18, %32 : vector<8x128xi32>
    %34 = arith.select %33, %17, %31 : vector<8x128xi1>, vector<8x128xf32>
    %c0_19 = arith.constant 0 : index
    %c0_20 = arith.constant 0 : index
    %35 = vector.load %arg8[%c0_19, %c0_20] : memref<8x128xf32, #tpu.memory_space<vmem>>, vector<8x128xf32>
    tpu.vector_store %arg8[%c0_19, %c0_20], %34 {strides = array<i32>} : memref<8x128xf32, #tpu.memory_space<vmem>>, vector<8x128xf32>,
    return
  }
  func.func @transform_0(%arg0: i32) -> (i32, i32) {
    %c0_i32 = arith.constant 0 : i32
    %c0_i32_0 = arith.constant 0 : i32
    return %c0_i32, %arg0 : i32, i32
  }
  func.func @transform_1(%arg0: i32) -> (i32, i32) {
    %c0_i32 = arith.constant 0 : i32
    %c0_i32_0 = arith.constant 0 : i32
    %c0_i32_1 = arith.constant 0 : i32
    return %c0_i32, %c0_i32_0 : i32, i32
  }
  func.func @transform_2(%arg0: i32) -> (i32, i32) {
    %c0_i32 = arith.constant 0 : i32
    %c0_i32_0 = arith.constant 0 : i32
    %c0_i32_1 = arith.constant 0 : i32
    return %c0_i32, %c0_i32_0 : i32, i32
  }
  func.func @transform_3(%arg0: i32) -> (i32, i32) {
    %c0_i32 = arith.constant 0 : i32
    %c0_i32_0 = arith.constant 0 : i32
    %c0_i32_1 = arith.constant 0 : i32
    return %c0_i32, %c0_i32_0 : i32, i32
  }
  func.func @transform_4(%arg0: i32) -> (i32, i32) {
    %c0_i32 = arith.constant 0 : i32
    %c0_i32_0 = arith.constant 0 : i32
    %c0_i32_1 = arith.constant 0 : i32
    return %c0_i32, %c0_i32_0 : i32, i32
  }
  func.func @transform_5(%arg0: i32) -> (i32, i32) {
    %c0_i32 = arith.constant 0 : i32
    %c0_i32_0 = arith.constant 0 : i32
    %c0_i32_1 = arith.constant 0 : i32
    return %c0_i32, %c0_i32_0 : i32, i32
  }
  func.func @transform_6(%arg0: i32) -> (i32, i32) {
    %c0_i32 = arith.constant 0 : i32
    %c0_i32_0 = arith.constant 0 : i32
    %c0_i32_1 = arith.constant 0 : i32
    return %c0_i32, %c0_i32_0 : i32, i32
  }
  func.func @transform_7(%arg0: i32) -> (i32, i32) {
    %c0_i32 = arith.constant 0 : i32
    %c0_i32_0 = arith.constant 0 : i32
    return %c0_i32, %arg0 : i32, i32
  }
}

</mosaic_0001>

<llo_original>
// kernel: tpu_custom_call.1
$region0: #{tpu_custom_call.1}
  #allocation0 [shape = 'u32[]', space=smem, size = 0x4, offset = 0x4, fixed_abs, tag = 'smem constant byte address 0x4 - core index']
  #allocation1 [shape = 'u32[72,128]{1,0:T(1,128)}', space=vmem, size = 0x9000, scoped, tag = 'internal scratch']
  %s0 = inlined_call_operand.vmem [shape: f32[8,128], index: 0, kind: input, shape index: {}]
  %s1 = inlined_call_operand.vmem [shape: f32[64,8], index: 1, kind: input, shape index: {}]
  %s2 = inlined_call_operand.vmem [shape: f32[64,1], index: 2, kind: input, shape index: {}]
  %s3 = inlined_call_operand.vmem [shape: f32[32,64], index: 3, kind: input, shape index: {}]
  %s4 = inlined_call_operand.vmem [shape: f32[32,1], index: 4, kind: input, shape index: {}]
  %s5 = inlined_call_operand.vmem [shape: f32[8,32], index: 5, kind: input, shape index: {}]
  %s6 = inlined_call_operand.vmem [shape: f32[8,1], index: 6, kind: input, shape index: {}]
  %s7 = inlined_call_operand.hbm [shape: f32[8,128], index: 7, kind: output, shape index: {}]
  %s8 = sld [smem:[#allocation0]]
  $region38: #{tpu_custom_call.1} parent=0
    _
  %s10 = ssub.s32 1, %s8
  %s11 = scalar_select 0, %s10, %s8
  $region1: #{tpu_custom_call.1} parent=0
    #allocation2 [shape = 'u8[4096]{0}', space=vmem, size = 0x1000, scoped, tag = 'output window, operand 0, single buffered']
    #allocation3 [shape = 's32[1]{0}', space=sflag, size = 0x4, scoped, tag = 'scoped memory for tpu_custom_call.1']
    %12 = vsyncpa [#allocation3], 0
    // Predicated region
    $region2: #{tpu_custom_call.1} parent=1 // pred_check
      _
    $region3: #{tpu_custom_call.1} parent=1 // pred_check_branch
      %14 = sbr.rel (0) target = $region5
    $region4: #{tpu_custom_call.1} parent=1 // pred_region
      _
    $region5: #{tpu_custom_call.1} parent=1 // pred_fallthru
      _
    // Predicated region
    $region6: #{tpu_custom_call.1} parent=1 // pred_check
      _
    $region7: #{tpu_custom_call.1} parent=1 // pred_check_branch
      %16 = sbr.rel (0) target = $region9
    $region8: #{tpu_custom_call.1} parent=1 // pred_region
      _
    $region9: #{tpu_custom_call.1} parent=1 // pred_fallthru
      _
    // Predicated region
    $region10: #{tpu_custom_call.1} parent=1 // pred_check
      _
    $region11: #{tpu_custom_call.1} parent=1 // pred_check_branch
      %18 = sbr.rel (0) target = $region13
    $region12: #{tpu_custom_call.1} parent=1 // pred_region
      _
    $region13: #{tpu_custom_call.1} parent=1 // pred_fallthru
      _
    // Predicated region
    $region14: #{tpu_custom_call.1} parent=1 // pred_check
      _
    $region15: #{tpu_custom_call.1} parent=1 // pred_check_branch
      %20 = sbr.rel (0) target = $region17
    $region16: #{tpu_custom_call.1} parent=1 // pred_region
      _
    $region17: #{tpu_custom_call.1} parent=1 // pred_fallthru
      _
    // Predicated region
    $region18: #{tpu_custom_call.1} parent=1 // pred_check
      _
    $region19: #{tpu_custom_call.1} parent=1 // pred_check_branch
      %22 = sbr.rel (0) target = $region21
    $region20: #{tpu_custom_call.1} parent=1 // pred_region
      _
    $region21: #{tpu_custom_call.1} parent=1 // pred_fallthru
      _
    // Predicated region
    $region22: #{tpu_custom_call.1} parent=1 // pred_check
      _
    $region23: #{tpu_custom_call.1} parent=1 // pred_check_branch
      %24 = sbr.rel (0) target = $region25
    $region24: #{tpu_custom_call.1} parent=1 // pred_region
      _
    $region25: #{tpu_custom_call.1} parent=1 // pred_fallthru
      _
    // Predicated region
    $region26: #{tpu_custom_call.1} parent=1 // pred_check
      _
    $region27: #{tpu_custom_call.1} parent=1 // pred_check_branch
      %26 = sbr.rel (0) target = $region29
    $region28: #{tpu_custom_call.1} parent=1 // pred_region
      _
    $region29: #{tpu_custom_call.1} parent=1 // pred_fallthru
      _
    %v27 = vld [vmem:[%s0] sm:$0xff]
    %v28 = vld [vmem:[%s1] sm:$0xff]
    %v29 = vld [vmem:[%s1 + $0x8] sm:$0xff]
    %v30 = vld [vmem:[%s1 + $0x10] sm:$0xff]
    %v31 = vld [vmem:[%s1 + $0x18] sm:$0xff]
    %v32 = vld [vmem:[%s1 + $0x20] sm:$0xff]
    %v33 = vld [vmem:[%s1 + $0x28] sm:$0xff]
    %v34 = vld [vmem:[%s1 + $0x30] sm:$0xff]
    %v35 = vld [vmem:[%s1 + $0x38] sm:$0xff]
    %v36 = vld [vmem:[%s2] sm:$0xff]
    %v37 = vld [vmem:[%s2 + $0x8] sm:$0xff]
    %v38 = vld [vmem:[%s2 + $0x10] sm:$0xff]
    %v39 = vld [vmem:[%s2 + $0x18] sm:$0xff]
    %v40 = vld [vmem:[%s2 + $0x20] sm:$0xff]
    %v41 = vld [vmem:[%s2 + $0x28] sm:$0xff]
    %v42 = vld [vmem:[%s2 + $0x30] sm:$0xff]
    %v43 = vld [vmem:[%s2 + $0x38] sm:$0xff]
    %45 = vset.pattern.permute.xlu0 0
    %46 = vperm.xlu0 %45, %v36
    %v47 = vpop.permute.xlu0 %46
    %50 = vset.pattern.permute.xlu0 0
    %51 = vperm.xlu0 %50, %v37
    %v52 = vpop.permute.xlu0 %51
    %55 = vset.pattern.permute.xlu0 0
    %56 = vperm.xlu0 %55, %v38
    %v57 = vpop.permute.xlu0 %56
    %60 = vset.pattern.permute.xlu0 0
    %61 = vperm.xlu0 %60, %v39
    %v62 = vpop.permute.xlu0 %61
    %65 = vset.pattern.permute.xlu0 0
    %66 = vperm.xlu0 %65, %v40
    %v67 = vpop.permute.xlu0 %66
    %70 = vset.pattern.permute.xlu0 0
    %71 = vperm.xlu0 %70, %v41
    %v72 = vpop.permute.xlu0 %71
    %75 = vset.pattern.permute.xlu0 0
    %76 = vperm.xlu0 %75, %v42
    %v77 = vpop.permute.xlu0 %76
    %80 = vset.pattern.permute.xlu0 0
    %81 = vperm.xlu0 %80, %v43
    %v82 = vpop.permute.xlu0 %81
    %vm84 = vcmask 64512
    %v86 = vsel %vm84, %v28, 0
    %v89 = vsel %vm84, %v29, 0
    %v92 = vsel %vm84, %v30, 0
    %v95 = vsel %vm84, %v31, 0
    %v98 = vsel %vm84, %v32, 0
    %v101 = vsel %vm84, %v33, 0
    %v104 = vsel %vm84, %v34, 0
    %v107 = vsel %vm84, %v35, 0
    %109 = vmatpush.msra.mxu0 0.0
    %110 = vmatpush.msra.mxu0 0.0
    %111 = vmatpush.msra.mxu0 0.0
    %112 = vmatpush.msra.mxu0 0.0
    %113 = vmatpush.msra.mxu0 0.0
    %114 = vmatpush.msra.mxu0 0.0
    %115 = vmatpush.msra.mxu0 0.0
    %116 = vmatpush.msra.mxu0 0.0
    %117 = vmatpush.msra.mxu0 0.0
    %118 = vmatpush.msra.mxu0 0.0
    %119 = vmatpush.msra.mxu0 0.0
    %120 = vmatpush.msra.mxu0 0.0
    %121 = vmatpush.msra.mxu0 0.0
    %122 = vmatpush.msra.mxu0 0.0
    %123 = vmatpush.msra.mxu0 0.0
    %v124 = vand.u32 %v27, 4294901760
    %125 = vmatpush.msra.mxu0 %v124
    %v126 = vand.u32 %v86, 4294901760
    %v127 = vsub.f32 %v86, %v126
    %v128 = vand.u32 %v127, 4294901760
    %v129 = vsub.f32 %v127, %v128
    %v130 = vand.u32 %v129, 4294901760
    %131 = vmatmul.f32.gmra.mxu0 %v130
    %v132 = vpop.f32.mrf.mxu0
    %v133 = vadd.f32 %v47, %v132
    %v134 = vand.u32 %v89, 4294901760
    %v135 = vsub.f32 %v89, %v134
    %v136 = vand.u32 %v135, 4294901760
    %v137 = vsub.f32 %v135, %v136
    %v138 = vand.u32 %v137, 4294901760
    %139 = vmatmul.f32.gmra.mxu0 %v138
    %v140 = vpop.f32.mrf.mxu0
    %v141 = vadd.f32 %v52, %v140
    %v142 = vand.u32 %v92, 4294901760
    %v143 = vsub.f32 %v92, %v142
    %v144 = vand.u32 %v143, 4294901760
    %v145 = vsub.f32 %v143, %v144
    %v146 = vand.u32 %v145, 4294901760
    %147 = vmatmul.f32.gmra.mxu0 %v146
    %v148 = vpop.f32.mrf.mxu0
    %v149 = vadd.f32 %v57, %v148
    %v150 = vand.u32 %v95, 4294901760
    %v151 = vsub.f32 %v95, %v150
    %v152 = vand.u32 %v151, 4294901760
    %v153 = vsub.f32 %v151, %v152
    %v154 = vand.u32 %v153, 4294901760
    %155 = vmatmul.f32.gmra.mxu0 %v154
    %v156 = vpop.f32.mrf.mxu0
    %v157 = vadd.f32 %v62, %v156
    %v158 = vand.u32 %v98, 4294901760
    %v159 = vsub.f32 %v98, %v158
    %v160 = vand.u32 %v159, 4294901760
    %v161 = vsub.f32 %v159, %v160
    %v162 = vand.u32 %v161, 4294901760
    %163 = vmatmul.f32.gmra.mxu0 %v162
    %v164 = vpop.f32.mrf.mxu0
    %v165 = vadd.f32 %v67, %v164
    %v166 = vand.u32 %v101, 4294901760
    %v167 = vsub.f32 %v101, %v166
    %v168 = vand.u32 %v167, 4294901760
    %v169 = vsub.f32 %v167, %v168
    %v170 = vand.u32 %v169, 4294901760
    %171 = vmatmul.f32.gmra.mxu0 %v170
    %v172 = vpop.f32.mrf.mxu0
    %v173 = vadd.f32 %v72, %v172
    %v174 = vand.u32 %v104, 4294901760
    %v175 = vsub.f32 %v104, %v174
    %v176 = vand.u32 %v175, 4294901760
    %v177 = vsub.f32 %v175, %v176
    %v178 = vand.u32 %v177, 4294901760
    %179 = vmatmul.f32.gmra.mxu0 %v178
    %v180 = vpop.f32.mrf.mxu0
    %v181 = vadd.f32 %v77, %v180
    %v182 = vand.u32 %v107, 4294901760
    %v183 = vsub.f32 %v107, %v182
    %v184 = vand.u32 %v183, 4294901760
    %v185 = vsub.f32 %v183, %v184
    %v186 = vand.u32 %v185, 4294901760
    %187 = vmatmul.f32.gmra.mxu0 %v186
    %v188 = vpop.f32.mrf.mxu0
    %v189 = vadd.f32 %v82, %v188
    %190 = vdwg.mxu0
    %191 = vmatpush.msra.mxu0 0.0
    %192 = vmatpush.msra.mxu0 0.0
    %193 = vmatpush.msra.mxu0 0.0
    %194 = vmatpush.msra.mxu0 0.0
    %195 = vmatpush.msra.mxu0 0.0
    %196 = vmatpush.msra.mxu0 0.0
    %197 = vmatpush.msra.mxu0 0.0
    %198 = vmatpush.msra.mxu0 0.0
    %199 = vmatpush.msra.mxu0 0.0
    %200 = vmatpush.msra.mxu0 0.0
    %201 = vmatpush.msra.mxu0 0.0
    %202 = vmatpush.msra.mxu0 0.0
    %203 = vmatpush.msra.mxu0 0.0
    %204 = vmatpush.msra.mxu0 0.0
    %205 = vmatpush.msra.mxu0 0.0
    %v206 = vand.u32 %v27, 4294901760
    %v207 = vsub.f32 %v27, %v206
    %v208 = vand.u32 %v207, 4294901760
    %v209 = vsub.f32 %v207, %v208
    %v210 = vand.u32 %v209, 4294901760
    %211 = vmatpush.msra.mxu0 %v210
    %v212 = vand.u32 %v86, 4294901760
    %213 = vmatmul.f32.gmra.mxu0 %v212
    %v214 = vpop.f32.mrf.mxu0
    %v215 = vadd.f32 %v133, %v214
    %v216 = vand.u32 %v89, 4294901760
    %217 = vmatmul.f32.gmra.mxu0 %v216
    %v218 = vpop.f32.mrf.mxu0
    %v219 = vadd.f32 %v141, %v218
    %v220 = vand.u32 %v92, 4294901760
    %221 = vmatmul.f32.gmra.mxu0 %v220
    %v222 = vpop.f32.mrf.mxu0
    %v223 = vadd.f32 %v149, %v222
    %v224 = vand.u32 %v95, 4294901760
    %225 = vmatmul.f32.gmra.mxu0 %v224
    %v226 = vpop.f32.mrf.mxu0
    %v227 = vadd.f32 %v157, %v226
    %v228 = vand.u32 %v98, 4294901760
    %229 = vmatmul.f32.gmra.mxu0 %v228
    %v230 = vpop.f32.mrf.mxu0
    %v231 = vadd.f32 %v165, %v230
    %v232 = vand.u32 %v101, 4294901760
    %233 = vmatmul.f32.gmra.mxu0 %v232
    %v234 = vpop.f32.mrf.mxu0
    %v235 = vadd.f32 %v173, %v234
    %v236 = vand.u32 %v104, 4294901760
    %237 = vmatmul.f32.gmra.mxu0 %v236
    %v238 = vpop.f32.mrf.mxu0
    %v239 = vadd.f32 %v181, %v238
    %v240 = vand.u32 %v107, 4294901760
    %241 = vmatmul.f32.gmra.mxu0 %v240
    %v242 = vpop.f32.mrf.mxu0
    %v243 = vadd.f32 %v189, %v242
    %244 = vdwg.mxu0
    %245 = vmatpush.msra.mxu0 0.0
    %246 = vmatpush.msra.mxu0 0.0
    %247 = vmatpush.msra.mxu0 0.0
    %248 = vmatpush.msra.mxu0 0.0
    %249 = vmatpush.msra.mxu0 0.0
    %250 = vmatpush.msra.mxu0 0.0
    %251 = vmatpush.msra.mxu0 0.0
    %252 = vmatpush.msra.mxu0 0.0
    %253 = vmatpush.msra.mxu0 0.0
    %254 = vmatpush.msra.mxu0 0.0
    %255 = vmatpush.msra.mxu0 0.0
    %256 = vmatpush.msra.mxu0 0.0
    %257 = vmatpush.msra.mxu0 0.0
    %258 = vmatpush.msra.mxu0 0.0
    %259 = vmatpush.msra.mxu0 0.0
    %v260 = vand.u32 %v27, 4294901760
    %v261 = vsub.f32 %v27, %v260
    %262 = vmatpush.msra.mxu0 %v261
    %v263 = vand.u32 %v86, 4294901760
    %v264 = vsub.f32 %v86, %v263
    %265 = vmatmul.f32.gmra.mxu0 %v264
    %v266 = vpop.f32.mrf.mxu0
    %v267 = vadd.f32 %v215, %v266
    %v268 = vand.u32 %v89, 4294901760
    %v269 = vsub.f32 %v89, %v268
    %270 = vmatmul.f32.gmra.mxu0 %v269
    %v271 = vpop.f32.mrf.mxu0
    %v272 = vadd.f32 %v219, %v271
    %v273 = vand.u32 %v92, 4294901760
    %v274 = vsub.f32 %v92, %v273
    %275 = vmatmul.f32.gmra.mxu0 %v274
    %v276 = vpop.f32.mrf.mxu0
    %v277 = vadd.f32 %v223, %v276
    %v278 = vand.u32 %v95, 4294901760
    %v279 = vsub.f32 %v95, %v278
    %280 = vmatmul.f32.gmra.mxu0 %v279
    %v281 = vpop.f32.mrf.mxu0
    %v282 = vadd.f32 %v227, %v281
    %v283 = vand.u32 %v98, 4294901760
    %v284 = vsub.f32 %v98, %v283
    %285 = vmatmul.f32.gmra.mxu0 %v284
    %v286 = vpop.f32.mrf.mxu0
    %v287 = vadd.f32 %v231, %v286
    %v288 = vand.u32 %v101, 4294901760
    %v289 = vsub.f32 %v101, %v288
    %290 = vmatmul.f32.gmra.mxu0 %v289
    %v291 = vpop.f32.mrf.mxu0
    %v292 = vadd.f32 %v235, %v291
    %v293 = vand.u32 %v104, 4294901760
    %v294 = vsub.f32 %v104, %v293
    %295 = vmatmul.f32.gmra.mxu0 %v294
    %v296 = vpop.f32.mrf.mxu0
    %v297 = vadd.f32 %v239, %v296
    %v298 = vand.u32 %v107, 4294901760
    %v299 = vsub.f32 %v107, %v298
    %300 = vmatmul.f32.gmra.mxu0 %v299
    %v301 = vpop.f32.mrf.mxu0
    %v302 = vadd.f32 %v243, %v301
    %303 = vdwg.mxu0
    %304 = vmatpush.msra.mxu0 0.0
    %305 = vmatpush.msra.mxu0 0.0
    %306 = vmatpush.msra.mxu0 0.0
    %307 = vmatpush.msra.mxu0 0.0
    %308 = vmatpush.msra.mxu0 0.0
    %309 = vmatpush.msra.mxu0 0.0
    %310 = vmatpush.msra.mxu0 0.0
    %311 = vmatpush.msra.mxu0 0.0
    %312 = vmatpush.msra.mxu0 0.0
    %313 = vmatpush.msra.mxu0 0.0
    %314 = vmatpush.msra.mxu0 0.0
    %315 = vmatpush.msra.mxu0 0.0
    %316 = vmatpush.msra.mxu0 0.0
    %317 = vmatpush.msra.mxu0 0.0
    %318 = vmatpush.msra.mxu0 0.0
    %v319 = vand.u32 %v27, 4294901760
    %320 = vmatpush.msra.mxu0 %v319
    %v321 = vand.u32 %v86, 4294901760
    %v322 = vsub.f32 %v86, %v321
    %v323 = vand.u32 %v322, 4294901760
    %324 = vmatmul.f32.gmra.mxu0 %v323
    %v325 = vpop.f32.mrf.mxu0
    %v326 = vadd.f32 %v267, %v325
    %v327 = vand.u32 %v89, 4294901760
    %v328 = vsub.f32 %v89, %v327
    %v329 = vand.u32 %v328, 4294901760
    %330 = vmatmul.f32.gmra.mxu0 %v329
    %v331 = vpop.f32.mrf.mxu0
    %v332 = vadd.f32 %v272, %v331
    %v333 = vand.u32 %v92, 4294901760
    %v334 = vsub.f32 %v92, %v333
    %v335 = vand.u32 %v334, 4294901760
    %336 = vmatmul.f32.gmra.mxu0 %v335
    %v337 = vpop.f32.mrf.mxu0
    %v338 = vadd.f32 %v277, %v337
    %v339 = vand.u32 %v95, 4294901760
    %v340 = vsub.f32 %v95, %v339
    %v341 = vand.u32 %v340, 4294901760
    %342 = vmatmul.f32.gmra.mxu0 %v341
    %v343 = vpop.f32.mrf.mxu0
    %v344 = vadd.f32 %v282, %v343
    %v345 = vand.u32 %v98, 4294901760
    %v346 = vsub.f32 %v98, %v345
    %v347 = vand.u32 %v346, 4294901760
    %348 = vmatmul.f32.gmra.mxu0 %v347
    %v349 = vpop.f32.mrf.mxu0
    %v350 = vadd.f32 %v287, %v349
    %v351 = vand.u32 %v101, 4294901760
    %v352 = vsub.f32 %v101, %v351
    %v353 = vand.u32 %v352, 4294901760
    %354 = vmatmul.f32.gmra.mxu0 %v353
    %v355 = vpop.f32.mrf.mxu0
    %v356 = vadd.f32 %v292, %v355
    %v357 = vand.u32 %v104, 4294901760
    %v358 = vsub.f32 %v104, %v357
    %v359 = vand.u32 %v358, 4294901760
    %360 = vmatmul.f32.gmra.mxu0 %v359
    %v361 = vpop.f32.mrf.mxu0
    %v362 = vadd.f32 %v297, %v361
    %v363 = vand.u32 %v107, 4294901760
    %v364 = vsub.f32 %v107, %v363
    %v365 = vand.u32 %v364, 4294901760
    %366 = vmatmul.f32.gmra.mxu0 %v365
    %v367 = vpop.f32.mrf.mxu0
    %v368 = vadd.f32 %v302, %v367
    %369 = vdwg.mxu0
    %370 = vmatpush.msra.mxu0 0.0
    %371 = vmatpush.msra.mxu0 0.0
    %372 = vmatpush.msra.mxu0 0.0
    %373 = vmatpush.msra.mxu0 0.0
    %374 = vmatpush.msra.mxu0 0.0
    %375 = vmatpush.msra.mxu0 0.0
    %376 = vmatpush.msra.mxu0 0.0
    %377 = vmatpush.msra.mxu0 0.0
    %378 = vmatpush.msra.mxu0 0.0
    %379 = vmatpush.msra.mxu0 0.0
    %380 = vmatpush.msra.mxu0 0.0
    %381 = vmatpush.msra.mxu0 0.0
    %382 = vmatpush.msra.mxu0 0.0
    %383 = vmatpush.msra.mxu0 0.0
    %384 = vmatpush.msra.mxu0 0.0
    %v385 = vand.u32 %v27, 4294901760
    %v386 = vsub.f32 %v27, %v385
    %v387 = vand.u32 %v386, 4294901760
    %388 = vmatpush.msra.mxu0 %v387
    %v389 = vand.u32 %v86, 4294901760
    %390 = vmatmul.f32.gmra.mxu0 %v389
    %v391 = vpop.f32.mrf.mxu0
    %v392 = vadd.f32 %v326, %v391
    %v393 = vand.u32 %v89, 4294901760
    %394 = vmatmul.f32.gmra.mxu0 %v393
    %v395 = vpop.f32.mrf.mxu0
    %v396 = vadd.f32 %v332, %v395
    %v397 = vand.u32 %v92, 4294901760
    %398 = vmatmul.f32.gmra.mxu0 %v397
    %v399 = vpop.f32.mrf.mxu0
    %v400 = vadd.f32 %v338, %v399
    %v401 = vand.u32 %v95, 4294901760
    %402 = vmatmul.f32.gmra.mxu0 %v401
    %v403 = vpop.f32.mrf.mxu0
    %v404 = vadd.f32 %v344, %v403
    %v405 = vand.u32 %v98, 4294901760
    %406 = vmatmul.f32.gmra.mxu0 %v405
    %v407 = vpop.f32.mrf.mxu0
    %v408 = vadd.f32 %v350, %v407
    %v409 = vand.u32 %v101, 4294901760
    %410 = vmatmul.f32.gmra.mxu0 %v409
    %v411 = vpop.f32.mrf.mxu0
    %v412 = vadd.f32 %v356, %v411
    %v413 = vand.u32 %v104, 4294901760
    %414 = vmatmul.f32.gmra.mxu0 %v413
    %v415 = vpop.f32.mrf.mxu0
    %v416 = vadd.f32 %v362, %v415
    %v417 = vand.u32 %v107, 4294901760
    %418 = vmatmul.f32.gmra.mxu0 %v417
    %v419 = vpop.f32.mrf.mxu0
    %v420 = vadd.f32 %v368, %v419
    %421 = vdwg.mxu0
    %422 = vmatpush.msra.mxu0 0.0
    %423 = vmatpush.msra.mxu0 0.0
    %424 = vmatpush.msra.mxu0 0.0
    %425 = vmatpush.msra.mxu0 0.0
    %426 = vmatpush.msra.mxu0 0.0
    %427 = vmatpush.msra.mxu0 0.0
    %428 = vmatpush.msra.mxu0 0.0
    %429 = vmatpush.msra.mxu0 0.0
    %430 = vmatpush.msra.mxu0 0.0
    %431 = vmatpush.msra.mxu0 0.0
    %432 = vmatpush.msra.mxu0 0.0
    %433 = vmatpush.msra.mxu0 0.0
    %434 = vmatpush.msra.mxu0 0.0
    %435 = vmatpush.msra.mxu0 0.0
    %436 = vmatpush.msra.mxu0 0.0
    %v437 = vand.u32 %v27, 4294901760
    %438 = vmatpush.msra.mxu0 %v437
    %v439 = vand.u32 %v86, 4294901760
    %440 = vmatmul.f32.gmra.mxu0 %v439
    %v441 = vpop.f32.mrf.mxu0
    %v442 = vadd.f32 %v392, %v441
    %v443 = vand.u32 %v89, 4294901760
    %444 = vmatmul.f32.gmra.mxu0 %v443
    %v445 = vpop.f32.mrf.mxu0
    %v446 = vadd.f32 %v396, %v445
    %v447 = vand.u32 %v92, 4294901760
    %448 = vmatmul.f32.gmra.mxu0 %v447
    %v449 = vpop.f32.mrf.mxu0
    %v450 = vadd.f32 %v400, %v449
    %v451 = vand.u32 %v95, 4294901760
    %452 = vmatmul.f32.gmra.mxu0 %v451
    %v453 = vpop.f32.mrf.mxu0
    %v454 = vadd.f32 %v404, %v453
    %v455 = vand.u32 %v98, 4294901760
    %456 = vmatmul.f32.gmra.mxu0 %v455
    %v457 = vpop.f32.mrf.mxu0
    %v458 = vadd.f32 %v408, %v457
    %v459 = vand.u32 %v101, 4294901760
    %460 = vmatmul.f32.gmra.mxu0 %v459
    %v461 = vpop.f32.mrf.mxu0
    %v462 = vadd.f32 %v412, %v461
    %v463 = vand.u32 %v104, 4294901760
    %464 = vmatmul.f32.gmra.mxu0 %v463
    %v465 = vpop.f32.mrf.mxu0
    %v466 = vadd.f32 %v416, %v465
    %v467 = vand.u32 %v107, 4294901760
    %468 = vmatmul.f32.gmra.mxu0 %v467
    %v469 = vpop.f32.mrf.mxu0
    %v470 = vadd.f32 %v420, %v469
    %471 = vdwg.mxu0
    %v472 = vtanh.pop %v442
    %v473 = vtanh.pop %v446
    %v474 = vtanh.pop %v450
    %v475 = vtanh.pop %v454
    %v476 = vtanh.pop %v458
    %v477 = vtanh.pop %v462
    %v478 = vtanh.pop %v466
    %v479 = vtanh.pop %v470
    %v480 = vld [vmem:[%s3] sm:$0xff]
    %v481 = vld [vmem:[%s3 + $0x8] sm:$0xff]
    %v482 = vld [vmem:[%s3 + $0x10] sm:$0xff]
    %v483 = vld [vmem:[%s3 + $0x18] sm:$0xff]
    %v484 = vld [vmem:[%s4] sm:$0xff]
    %v485 = vld [vmem:[%s4 + $0x8] sm:$0xff]
    %v486 = vld [vmem:[%s4 + $0x10] sm:$0xff]
    %v487 = vld [vmem:[%s4 + $0x18] sm:$0xff]
    %489 = vset.pattern.permute.xlu0 0
    %490 = vperm.xlu0 %489, %v484
    %v491 = vpop.permute.xlu0 %490
    %494 = vset.pattern.permute.xlu0 0
    %495 = vperm.xlu0 %494, %v485
    %v496 = vpop.permute.xlu0 %495
    %499 = vset.pattern.permute.xlu0 0
    %500 = vperm.xlu0 %499, %v486
    %v501 = vpop.permute.xlu0 %500
    %504 = vset.pattern.permute.xlu0 0
    %505 = vperm.xlu0 %504, %v487
    %v506 = vpop.permute.xlu0 %505
    %vm508 = vcmask 523264
    %v510 = vsel %vm508, %v480, 0
    %v513 = vsel %vm508, %v481, 0
    %v516 = vsel %vm508, %v482, 0
    %v519 = vsel %vm508, %v483, 0
    %521 = vmatpush.msra.mxu0 0.0
    %522 = vmatpush.msra.mxu0 0.0
    %523 = vmatpush.msra.mxu0 0.0
    %524 = vmatpush.msra.mxu0 0.0
    %525 = vmatpush.msra.mxu0 0.0
    %526 = vmatpush.msra.mxu0 0.0
    %527 = vmatpush.msra.mxu0 0.0
    %528 = vmatpush.msra.mxu0 0.0
    %v529 = vand.u32 %v479, 4294901760
    %530 = vmatpush.msra.mxu0 %v529
    %v531 = vand.u32 %v478, 4294901760
    %532 = vmatpush.msra.mxu0 %v531
    %v533 = vand.u32 %v477, 4294901760
    %534 = vmatpush.msra.mxu0 %v533
    %v535 = vand.u32 %v476, 4294901760
    %536 = vmatpush.msra.mxu0 %v535
    %v537 = vand.u32 %v475, 4294901760
    %538 = vmatpush.msra.mxu0 %v537
    %v539 = vand.u32 %v474, 4294901760
    %540 = vmatpush.msra.mxu0 %v539
    %v541 = vand.u32 %v473, 4294901760
    %542 = vmatpush.msra.mxu0 %v541
    %v543 = vand.u32 %v472, 4294901760
    %544 = vmatpush.msra.mxu0 %v543
    %v545 = vand.u32 %v510, 4294901760
    %v546 = vsub.f32 %v510, %v545
    %v547 = vand.u32 %v546, 4294901760
    %v548 = vsub.f32 %v546, %v547
    %v549 = vand.u32 %v548, 4294901760
    %550 = vmatmul.f32.gmra.mxu0 %v549
    %v551 = vpop.f32.mrf.mxu0
    %v552 = vadd.f32 %v491, %v551
    %v553 = vand.u32 %v513, 4294901760
    %v554 = vsub.f32 %v513, %v553
    %v555 = vand.u32 %v554, 4294901760
    %v556 = vsub.f32 %v554, %v555
    %v557 = vand.u32 %v556, 4294901760
    %558 = vmatmul.f32.gmra.mxu0 %v557
    %v559 = vpop.f32.mrf.mxu0
    %v560 = vadd.f32 %v496, %v559
    %v561 = vand.u32 %v516, 4294901760
    %v562 = vsub.f32 %v516, %v561
    %v563 = vand.u32 %v562, 4294901760
    %v564 = vsub.f32 %v562, %v563
    %v565 = vand.u32 %v564, 4294901760
    %566 = vmatmul.f32.gmra.mxu0 %v565
    %v567 = vpop.f32.mrf.mxu0
    %v568 = vadd.f32 %v501, %v567
    %v569 = vand.u32 %v519, 4294901760
    %v570 = vsub.f32 %v519, %v569
    %v571 = vand.u32 %v570, 4294901760
    %v572 = vsub.f32 %v570, %v571
    %v573 = vand.u32 %v572, 4294901760
    %574 = vmatmul.f32.gmra.mxu0 %v573
    %v575 = vpop.f32.mrf.mxu0
    %v576 = vadd.f32 %v506, %v575
    %577 = vdwg.mxu0
    %578 = vmatpush.msra.mxu0 0.0
    %579 = vmatpush.msra.mxu0 0.0
    %580 = vmatpush.msra.mxu0 0.0
    %581 = vmatpush.msra.mxu0 0.0
    %582 = vmatpush.msra.mxu0 0.0
    %583 = vmatpush.msra.mxu0 0.0
    %584 = vmatpush.msra.mxu0 0.0
    %585 = vmatpush.msra.mxu0 0.0
    %v586 = vand.u32 %v479, 4294901760
    %v587 = vsub.f32 %v479, %v586
    %v588 = vand.u32 %v587, 4294901760
    %v589 = vsub.f32 %v587, %v588
    %v590 = vand.u32 %v589, 4294901760
    %591 = vmatpush.msra.mxu0 %v590
    %v592 = vand.u32 %v478, 4294901760
    %v593 = vsub.f32 %v478, %v592
    %v594 = vand.u32 %v593, 4294901760
    %v595 = vsub.f32 %v593, %v594
    %v596 = vand.u32 %v595, 4294901760
    %597 = vmatpush.msra.mxu0 %v596
    %v598 = vand.u32 %v477, 4294901760
    %v599 = vsub.f32 %v477, %v598
    %v600 = vand.u32 %v599, 4294901760
    %v601 = vsub.f32 %v599, %v600
    %v602 = vand.u32 %v601, 4294901760
    %603 = vmatpush.msra.mxu0 %v602
    %v604 = vand.u32 %v476, 4294901760
    %v605 = vsub.f32 %v476, %v604
    %v606 = vand.u32 %v605, 4294901760
    %v607 = vsub.f32 %v605, %v606
    %v608 = vand.u32 %v607, 4294901760
    %609 = vmatpush.msra.mxu0 %v608
    %v610 = vand.u32 %v475, 4294901760
    %v611 = vsub.f32 %v475, %v610
    %v612 = vand.u32 %v611, 4294901760
    %v613 = vsub.f32 %v611, %v612
    %v614 = vand.u32 %v613, 4294901760
    %615 = vmatpush.msra.mxu0 %v614
    %v616 = vand.u32 %v474, 4294901760
    %v617 = vsub.f32 %v474, %v616
    %v618 = vand.u32 %v617, 4294901760
    %v619 = vsub.f32 %v617, %v618
    %v620 = vand.u32 %v619, 4294901760
    %621 = vmatpush.msra.mxu0 %v620
    %v622 = vand.u32 %v473, 4294901760
    %v623 = vsub.f32 %v473, %v622
    %v624 = vand.u32 %v623, 4294901760
    %v625 = vsub.f32 %v623, %v624
    %v626 = vand.u32 %v625, 4294901760
    %627 = vmatpush.msra.mxu0 %v626
    %v628 = vand.u32 %v472, 4294901760
    %v629 = vsub.f32 %v472, %v628
    %v630 = vand.u32 %v629, 4294901760
    %v631 = vsub.f32 %v629, %v630
    %v632 = vand.u32 %v631, 4294901760
    %633 = vmatpush.msra.mxu0 %v632
    %v634 = vand.u32 %v510, 4294901760
    %635 = vmatmul.f32.gmra.mxu0 %v634
    %v636 = vpop.f32.mrf.mxu0
    %v637 = vadd.f32 %v552, %v636
    %v638 = vand.u32 %v513, 4294901760
    %639 = vmatmul.f32.gmra.mxu0 %v638
    %v640 = vpop.f32.mrf.mxu0
    %v641 = vadd.f32 %v560, %v640
    %v642 = vand.u32 %v516, 4294901760
    %643 = vmatmul.f32.gmra.mxu0 %v642
    %v644 = vpop.f32.mrf.mxu0
    %v645 = vadd.f32 %v568, %v644
    %v646 = vand.u32 %v519, 4294901760
    %647 = vmatmul.f32.gmra.mxu0 %v646
    %v648 = vpop.f32.mrf.mxu0
    %v649 = vadd.f32 %v576, %v648
    %650 = vdwg.mxu0
    %651 = vmatpush.msra.mxu0 0.0
    %652 = vmatpush.msra.mxu0 0.0
    %653 = vmatpush.msra.mxu0 0.0
    %654 = vmatpush.msra.mxu0 0.0
    %655 = vmatpush.msra.mxu0 0.0
    %656 = vmatpush.msra.mxu0 0.0
    %657 = vmatpush.msra.mxu0 0.0
    %658 = vmatpush.msra.mxu0 0.0
    %v659 = vand.u32 %v479, 4294901760
    %v660 = vsub.f32 %v479, %v659
    %661 = vmatpush.msra.mxu0 %v660
    %v662 = vand.u32 %v478, 4294901760
    %v663 = vsub.f32 %v478, %v662
    %664 = vmatpush.msra.mxu0 %v663
    %v665 = vand.u32 %v477, 4294901760
    %v666 = vsub.f32 %v477, %v665
    %667 = vmatpush.msra.mxu0 %v666
    %v668 = vand.u32 %v476, 4294901760
    %v669 = vsub.f32 %v476, %v668
    %670 = vmatpush.msra.mxu0 %v669
    %v671 = vand.u32 %v475, 4294901760
    %v672 = vsub.f32 %v475, %v671
    %673 = vmatpush.msra.mxu0 %v672
    %v674 = vand.u32 %v474, 4294901760
    %v675 = vsub.f32 %v474, %v674
    %676 = vmatpush.msra.mxu0 %v675
    %v677 = vand.u32 %v473, 4294901760
    %v678 = vsub.f32 %v473, %v677
    %679 = vmatpush.msra.mxu0 %v678
    %v680 = vand.u32 %v472, 4294901760
    %v681 = vsub.f32 %v472, %v680
    %682 = vmatpush.msra.mxu0 %v681
    %v683 = vand.u32 %v510, 4294901760
    %v684 = vsub.f32 %v510, %v683
    %685 = vmatmul.f32.gmra.mxu0 %v684
    %v686 = vpop.f32.mrf.mxu0
    %v687 = vadd.f32 %v637, %v686
    %v688 = vand.u32 %v513, 4294901760
    %v689 = vsub.f32 %v513, %v688
    %690 = vmatmul.f32.gmra.mxu0 %v689
    %v691 = vpop.f32.mrf.mxu0
    %v692 = vadd.f32 %v641, %v691
    %v693 = vand.u32 %v516, 4294901760
    %v694 = vsub.f32 %v516, %v693
    %695 = vmatmul.f32.gmra.mxu0 %v694
    %v696 = vpop.f32.mrf.mxu0
    %v697 = vadd.f32 %v645, %v696
    %v698 = vand.u32 %v519, 4294901760
    %v699 = vsub.f32 %v519, %v698
    %700 = vmatmul.f32.gmra.mxu0 %v699
    %v701 = vpop.f32.mrf.mxu0
    %v702 = vadd.f32 %v649, %v701
    %703 = vdwg.mxu0
    %704 = vmatpush.msra.mxu0 0.0
    %705 = vmatpush.msra.mxu0 0.0
    %706 = vmatpush.msra.mxu0 0.0
    %707 = vmatpush.msra.mxu0 0.0
    %708 = vmatpush.msra.mxu0 0.0
    %709 = vmatpush.msra.mxu0 0.0
    %710 = vmatpush.msra.mxu0 0.0
    %711 = vmatpush.msra.mxu0 0.0
    %v712 = vand.u32 %v479, 4294901760
    %713 = vmatpush.msra.mxu0 %v712
    %v714 = vand.u32 %v478, 4294901760
    %715 = vmatpush.msra.mxu0 %v714
    %v716 = vand.u32 %v477, 4294901760
    %717 = vmatpush.msra.mxu0 %v716
    %v718 = vand.u32 %v476, 4294901760
    %719 = vmatpush.msra.mxu0 %v718
    %v720 = vand.u32 %v475, 4294901760
    %721 = vmatpush.msra.mxu0 %v720
    %v722 = vand.u32 %v474, 4294901760
    %723 = vmatpush.msra.mxu0 %v722
    %v724 = vand.u32 %v473, 4294901760
    %725 = vmatpush.msra.mxu0 %v724
    %v726 = vand.u32 %v472, 4294901760
    %727 = vmatpush.msra.mxu0 %v726
    %v728 = vand.u32 %v510, 4294901760
    %v729 = vsub.f32 %v510, %v728
    %v730 = vand.u32 %v729, 4294901760
    %731 = vmatmul.f32.gmra.mxu0 %v730
    %v732 = vpop.f32.mrf.mxu0
    %v733 = vadd.f32 %v687, %v732
    %v734 = vand.u32 %v513, 4294901760
    %v735 = vsub.f32 %v513, %v734
    %v736 = vand.u32 %v735, 4294901760
    %737 = vmatmul.f32.gmra.mxu0 %v736
    %v738 = vpop.f32.mrf.mxu0
    %v739 = vadd.f32 %v692, %v738
    %v740 = vand.u32 %v516, 4294901760
    %v741 = vsub.f32 %v516, %v740
    %v742 = vand.u32 %v741, 4294901760
    %743 = vmatmul.f32.gmra.mxu0 %v742
    %v744 = vpop.f32.mrf.mxu0
    %v745 = vadd.f32 %v697, %v744
    %v746 = vand.u32 %v519, 4294901760
    %v747 = vsub.f32 %v519, %v746
    %v748 = vand.u32 %v747, 4294901760
    %749 = vmatmul.f32.gmra.mxu0 %v748
    %v750 = vpop.f32.mrf.mxu0
    %v751 = vadd.f32 %v702, %v750
    %752 = vdwg.mxu0
    %753 = vmatpush.msra.mxu0 0.0
    %754 = vmatpush.msra.mxu0 0.0
    %755 = vmatpush.msra.mxu0 0.0
    %756 = vmatpush.msra.mxu0 0.0
    %757 = vmatpush.msra.mxu0 0.0
    %758 = vmatpush.msra.mxu0 0.0
    %759 = vmatpush.msra.mxu0 0.0
    %760 = vmatpush.msra.mxu0 0.0
    %v761 = vand.u32 %v479, 4294901760
    %v762 = vsub.f32 %v479, %v761
    %v763 = vand.u32 %v762, 4294901760
    %764 = vmatpush.msra.mxu0 %v763
    %v765 = vand.u32 %v478, 4294901760
    %v766 = vsub.f32 %v478, %v765
    %v767 = vand.u32 %v766, 4294901760
    %768 = vmatpush.msra.mxu0 %v767
    %v769 = vand.u32 %v477, 4294901760
    %v770 = vsub.f32 %v477, %v769
    %v771 = vand.u32 %v770, 4294901760
    %772 = vmatpush.msra.mxu0 %v771
    %v773 = vand.u32 %v476, 4294901760
    %v774 = vsub.f32 %v476, %v773
    %v775 = vand.u32 %v774, 4294901760
    %776 = vmatpush.msra.mxu0 %v775
    %v777 = vand.u32 %v475, 4294901760
    %v778 = vsub.f32 %v475, %v777
    %v779 = vand.u32 %v778, 4294901760
    %780 = vmatpush.msra.mxu0 %v779
    %v781 = vand.u32 %v474, 4294901760
    %v782 = vsub.f32 %v474, %v781
    %v783 = vand.u32 %v782, 4294901760
    %784 = vmatpush.msra.mxu0 %v783
    %v785 = vand.u32 %v473, 4294901760
    %v786 = vsub.f32 %v473, %v785
    %v787 = vand.u32 %v786, 4294901760
    %788 = vmatpush.msra.mxu0 %v787
    %v789 = vand.u32 %v472, 4294901760
    %v790 = vsub.f32 %v472, %v789
    %v791 = vand.u32 %v790, 4294901760
    %792 = vmatpush.msra.mxu0 %v791
    %v793 = vand.u32 %v510, 4294901760
    %794 = vmatmul.f32.gmra.mxu0 %v793
    %v795 = vpop.f32.mrf.mxu0
    %v796 = vadd.f32 %v733, %v795
    %v797 = vand.u32 %v513, 4294901760
    %798 = vmatmul.f32.gmra.mxu0 %v797
    %v799 = vpop.f32.mrf.mxu0
    %v800 = vadd.f32 %v739, %v799
    %v801 = vand.u32 %v516, 4294901760
    %802 = vmatmul.f32.gmra.mxu0 %v801
    %v803 = vpop.f32.mrf.mxu0
    %v804 = vadd.f32 %v745, %v803
    %v805 = vand.u32 %v519, 4294901760
    %806 = vmatmul.f32.gmra.mxu0 %v805
    %v807 = vpop.f32.mrf.mxu0
    %v808 = vadd.f32 %v751, %v807
    %809 = vdwg.mxu0
    %810 = vmatpush.msra.mxu0 0.0
    %811 = vmatpush.msra.mxu0 0.0
    %812 = vmatpush.msra.mxu0 0.0
    %813 = vmatpush.msra.mxu0 0.0
    %814 = vmatpush.msra.mxu0 0.0
    %815 = vmatpush.msra.mxu0 0.0
    %816 = vmatpush.msra.mxu0 0.0
    %817 = vmatpush.msra.mxu0 0.0
    %v818 = vand.u32 %v479, 4294901760
    %819 = vmatpush.msra.mxu0 %v818
    %v820 = vand.u32 %v478, 4294901760
    %821 = vmatpush.msra.mxu0 %v820
    %v822 = vand.u32 %v477, 4294901760
    %823 = vmatpush.msra.mxu0 %v822
    %v824 = vand.u32 %v476, 4294901760
    %825 = vmatpush.msra.mxu0 %v824
    %v826 = vand.u32 %v475, 4294901760
    %827 = vmatpush.msra.mxu0 %v826
    %v828 = vand.u32 %v474, 4294901760
    %829 = vmatpush.msra.mxu0 %v828
    %v830 = vand.u32 %v473, 4294901760
    %831 = vmatpush.msra.mxu0 %v830
    %v832 = vand.u32 %v472, 4294901760
    %833 = vmatpush.msra.mxu0 %v832
    %v834 = vand.u32 %v510, 4294901760
    %835 = vmatmul.f32.gmra.mxu0 %v834
    %v836 = vpop.f32.mrf.mxu0
    %v837 = vadd.f32 %v796, %v836
    %v838 = vand.u32 %v513, 4294901760
    %839 = vmatmul.f32.gmra.mxu0 %v838
    %v840 = vpop.f32.mrf.mxu0
    %v841 = vadd.f32 %v800, %v840
    %v842 = vand.u32 %v516, 4294901760
    %843 = vmatmul.f32.gmra.mxu0 %v842
    %v844 = vpop.f32.mrf.mxu0
    %v845 = vadd.f32 %v804, %v844
    %v846 = vand.u32 %v519, 4294901760
    %847 = vmatmul.f32.gmra.mxu0 %v846
    %v848 = vpop.f32.mrf.mxu0
    %v849 = vadd.f32 %v808, %v848
    %850 = vdwg.mxu0
    %v851 = vtanh.pop %v837
    %v852 = vtanh.pop %v841
    %v853 = vtanh.pop %v845
    %v854 = vtanh.pop %v849
    %v855 = vld [vmem:[%s5] sm:$0xff]
    %v856 = vld [vmem:[%s6] sm:$0xff]
    %858 = vset.pattern.permute.xlu0 0
    %859 = vperm.xlu0 %858, %v856
    %v860 = vpop.permute.xlu0 %859
    %vm862 = vcmask 261120
    %v864 = vsel %vm862, %v855, 0
    %866 = vmatpush.msra.mxu0 0.0
    %867 = vmatpush.msra.mxu0 0.0
    %868 = vmatpush.msra.mxu0 0.0
    %869 = vmatpush.msra.mxu0 0.0
    %870 = vmatpush.msra.mxu0 0.0
    %871 = vmatpush.msra.mxu0 0.0
    %872 = vmatpush.msra.mxu0 0.0
    %873 = vmatpush.msra.mxu0 0.0
    %874 = vmatpush.msra.mxu0 0.0
    %875 = vmatpush.msra.mxu0 0.0
    %876 = vmatpush.msra.mxu0 0.0
    %877 = vmatpush.msra.mxu0 0.0
    %v878 = vand.u32 %v854, 4294901760
    %879 = vmatpush.msra.mxu0 %v878
    %v880 = vand.u32 %v853, 4294901760
    %881 = vmatpush.msra.mxu0 %v880
    %v882 = vand.u32 %v852, 4294901760
    %883 = vmatpush.msra.mxu0 %v882
    %v884 = vand.u32 %v851, 4294901760
    %885 = vmatpush.msra.mxu0 %v884
    %v886 = vand.u32 %v864, 4294901760
    %v887 = vsub.f32 %v864, %v886
    %v888 = vand.u32 %v887, 4294901760
    %v889 = vsub.f32 %v887, %v888
    %v890 = vand.u32 %v889, 4294901760
    %891 = vmatmul.f32.gmra.mxu0 %v890
    %v892 = vpop.f32.mrf.mxu0
    %v893 = vadd.f32 %v860, %v892
    %894 = vdwg.mxu0
    %895 = vmatpush.msra.mxu0 0.0
    %896 = vmatpush.msra.mxu0 0.0
    %897 = vmatpush.msra.mxu0 0.0
    %898 = vmatpush.msra.mxu0 0.0
    %899 = vmatpush.msra.mxu0 0.0
    %900 = vmatpush.msra.mxu0 0.0
    %901 = vmatpush.msra.mxu0 0.0
    %902 = vmatpush.msra.mxu0 0.0
    %903 = vmatpush.msra.mxu0 0.0
    %904 = vmatpush.msra.mxu0 0.0
    %905 = vmatpush.msra.mxu0 0.0
    %906 = vmatpush.msra.mxu0 0.0
    %v907 = vand.u32 %v854, 4294901760
    %v908 = vsub.f32 %v854, %v907
    %v909 = vand.u32 %v908, 4294901760
    %v910 = vsub.f32 %v908, %v909
    %v911 = vand.u32 %v910, 4294901760
    %912 = vmatpush.msra.mxu0 %v911
    %v913 = vand.u32 %v853, 4294901760
    %v914 = vsub.f32 %v853, %v913
    %v915 = vand.u32 %v914, 4294901760
    %v916 = vsub.f32 %v914, %v915
    %v917 = vand.u32 %v916, 4294901760
    %918 = vmatpush.msra.mxu0 %v917
    %v919 = vand.u32 %v852, 4294901760
    %v920 = vsub.f32 %v852, %v919
    %v921 = vand.u32 %v920, 4294901760
    %v922 = vsub.f32 %v920, %v921
    %v923 = vand.u32 %v922, 4294901760
    %924 = vmatpush.msra.mxu0 %v923
    %v925 = vand.u32 %v851, 4294901760
    %v926 = vsub.f32 %v851, %v925
    %v927 = vand.u32 %v926, 4294901760
    %v928 = vsub.f32 %v926, %v927
    %v929 = vand.u32 %v928, 4294901760
    %930 = vmatpush.msra.mxu0 %v929
    %v931 = vand.u32 %v864, 4294901760
    %932 = vmatmul.f32.gmra.mxu0 %v931
    %v933 = vpop.f32.mrf.mxu0
    %v934 = vadd.f32 %v893, %v933
    %935 = vdwg.mxu0
    %936 = vmatpush.msra.mxu0 0.0
    %937 = vmatpush.msra.mxu0 0.0
    %938 = vmatpush.msra.mxu0 0.0
    %939 = vmatpush.msra.mxu0 0.0
    %940 = vmatpush.msra.mxu0 0.0
    %941 = vmatpush.msra.mxu0 0.0
    %942 = vmatpush.msra.mxu0 0.0
    %943 = vmatpush.msra.mxu0 0.0
    %944 = vmatpush.msra.mxu0 0.0
    %945 = vmatpush.msra.mxu0 0.0
    %946 = vmatpush.msra.mxu0 0.0
    %947 = vmatpush.msra.mxu0 0.0
    %v948 = vand.u32 %v854, 4294901760
    %v949 = vsub.f32 %v854, %v948
    %950 = vmatpush.msra.mxu0 %v949
    %v951 = vand.u32 %v853, 4294901760
    %v952 = vsub.f32 %v853, %v951
    %953 = vmatpush.msra.mxu0 %v952
    %v954 = vand.u32 %v852, 4294901760
    %v955 = vsub.f32 %v852, %v954
    %956 = vmatpush.msra.mxu0 %v955
    %v957 = vand.u32 %v851, 4294901760
    %v958 = vsub.f32 %v851, %v957
    %959 = vmatpush.msra.mxu0 %v958
    %v960 = vand.u32 %v864, 4294901760
    %v961 = vsub.f32 %v864, %v960
    %962 = vmatmul.f32.gmra.mxu0 %v961
    %v963 = vpop.f32.mrf.mxu0
    %v964 = vadd.f32 %v934, %v963
    %965 = vdwg.mxu0
    %966 = vmatpush.msra.mxu0 0.0
    %967 = vmatpush.msra.mxu0 0.0
    %968 = vmatpush.msra.mxu0 0.0
    %969 = vmatpush.msra.mxu0 0.0
    %970 = vmatpush.msra.mxu0 0.0
    %971 = vmatpush.msra.mxu0 0.0
    %972 = vmatpush.msra.mxu0 0.0
    %973 = vmatpush.msra.mxu0 0.0
    %974 = vmatpush.msra.mxu0 0.0
    %975 = vmatpush.msra.mxu0 0.0
    %976 = vmatpush.msra.mxu0 0.0
    %977 = vmatpush.msra.mxu0 0.0
    %v978 = vand.u32 %v854, 4294901760
    %979 = vmatpush.msra.mxu0 %v978
    %v980 = vand.u32 %v853, 4294901760
    %981 = vmatpush.msra.mxu0 %v980
    %v982 = vand.u32 %v852, 4294901760
    %983 = vmatpush.msra.mxu0 %v982
    %v984 = vand.u32 %v851, 4294901760
    %985 = vmatpush.msra.mxu0 %v984
    %v986 = vand.u32 %v864, 4294901760
    %v987 = vsub.f32 %v864, %v986
    %v988 = vand.u32 %v987, 4294901760
    %989 = vmatmul.f32.gmra.mxu0 %v988
    %v990 = vpop.f32.mrf.mxu0
    %v991 = vadd.f32 %v964, %v990
    %992 = vdwg.mxu0
    %993 = vmatpush.msra.mxu0 0.0
    %994 = vmatpush.msra.mxu0 0.0
    %995 = vmatpush.msra.mxu0 0.0
    %996 = vmatpush.msra.mxu0 0.0
    %997 = vmatpush.msra.mxu0 0.0
    %998 = vmatpush.msra.mxu0 0.0
    %999 = vmatpush.msra.mxu0 0.0
    %1000 = vmatpush.msra.mxu0 0.0
    %1001 = vmatpush.msra.mxu0 0.0
    %1002 = vmatpush.msra.mxu0 0.0
    %1003 = vmatpush.msra.mxu0 0.0
    %1004 = vmatpush.msra.mxu0 0.0
    %v1005 = vand.u32 %v854, 4294901760
    %v1006 = vsub.f32 %v854, %v1005
    %v1007 = vand.u32 %v1006, 4294901760
    %1008 = vmatpush.msra.mxu0 %v1007
    %v1009 = vand.u32 %v853, 4294901760
    %v1010 = vsub.f32 %v853, %v1009
    %v1011 = vand.u32 %v1010, 4294901760
    %1012 = vmatpush.msra.mxu0 %v1011
    %v1013 = vand.u32 %v852, 4294901760
    %v1014 = vsub.f32 %v852, %v1013
    %v1015 = vand.u32 %v1014, 4294901760
    %1016 = vmatpush.msra.mxu0 %v1015
    %v1017 = vand.u32 %v851, 4294901760
    %v1018 = vsub.f32 %v851, %v1017
    %v1019 = vand.u32 %v1018, 4294901760
    %1020 = vmatpush.msra.mxu0 %v1019
    %v1021 = vand.u32 %v864, 4294901760
    %1022 = vmatmul.f32.gmra.mxu0 %v1021
    %v1023 = vpop.f32.mrf.mxu0
    %v1024 = vadd.f32 %v991, %v1023
    %1025 = vdwg.mxu0
    %1026 = vmatpush.msra.mxu0 0.0
    %1027 = vmatpush.msra.mxu0 0.0
    %1028 = vmatpush.msra.mxu0 0.0
    %1029 = vmatpush.msra.mxu0 0.0
    %1030 = vmatpush.msra.mxu0 0.0
    %1031 = vmatpush.msra.mxu0 0.0
    %1032 = vmatpush.msra.mxu0 0.0
    %1033 = vmatpush.msra.mxu0 0.0
    %1034 = vmatpush.msra.mxu0 0.0
    %1035 = vmatpush.msra.mxu0 0.0
    %1036 = vmatpush.msra.mxu0 0.0
    %1037 = vmatpush.msra.mxu0 0.0
    %v1038 = vand.u32 %v854, 4294901760
    %1039 = vmatpush.msra.mxu0 %v1038
    %v1040 = vand.u32 %v853, 4294901760
    %1041 = vmatpush.msra.mxu0 %v1040
    %v1042 = vand.u32 %v852, 4294901760
    %1043 = vmatpush.msra.mxu0 %v1042
    %v1044 = vand.u32 %v851, 4294901760
    %1045 = vmatpush.msra.mxu0 %v1044
    %v1046 = vand.u32 %v864, 4294901760
    %1047 = vmatmul.f32.gmra.mxu0 %v1046
    %v1048 = vpop.f32.mrf.mxu0
    %v1049 = vadd.f32 %v1024, %v1048
    %1050 = vdwg.mxu0
    %v1051 = vlaneseq
    %v1052 = vshrl.u32 %v1051, 7
    %vm1053 = vcmp.lt.s32.totalorder %v1052, 2
    %v1054 = vsel %vm1053, %v1049, -1e+30
    %v1055 = vrot.slane %v1054, 4
    %v1056 = vmax.f32 %v1054, %v1055
    %v1057 = vrot.slane %v1056, 2
    %v1058 = vmax.f32 %v1056, %v1057
    %v1059 = vrot.slane %v1058, 1
    %v1060 = vmax.f32 %v1058, %v1059
    %v1061 = vsub.f32 %v1054, %v1060
    %v1062 = vmul.f32 %v1061, 1.442695
    %v1063 = vpow.pop %v1062
    %v1064 = vrot.slane %v1063, 4
    %v1065 = vadd.f32 %v1063, %v1064
    %v1066 = vrot.slane %v1065, 2
    %v1067 = vadd.f32 %v1065, %v1066
    %v1068 = vrot.slane %v1067, 1
    %v1069 = vadd.f32 %v1067, %v1068
    %v1070 = vrcp.pop %v1069
    %v1071 = vmul.f32 %v1069, %v1070
    %v1072 = vsub.f32 1.0, %v1071
    %v1073 = vmul.f32 %v1070, %v1072
    %v1074 = vadd.f32 %v1070, %v1073
    %vm1075 = vweird.f32 %v1069
    %vm1076 = vweird.f32 %v1070
    %vm1077 = vmor %vm1075, %vm1076
    %v1078 = vsel %vm1077, %v1070, %v1074
    %v1079 = vand.u32 2147483647, %v1069
    %vm1080 = vcmp.eq.f32.partialorder %v1079, 8.507059e+37
    %v1081 = vand.u32 %v1069, 2147483648
    %v1082 = vor.u32 1.1754944e-38, %v1081
    %v1083 = vsel %vm1080, %v1082, %v1078
    %v1084 = vmul.f32 %v1063, %v1083
    %vm1085 = vcmp.eq.s32.totalorder %v1052, 2
    %v1086 = vsel %vm1085, %v1049, %v1084
    %1087 = vst [vmem:[#allocation2] sm:$0xff] %v1086
    // Predicated region
    $region30: #{tpu_custom_call.1} parent=1 // pred_check
      _
    $region31: #{tpu_custom_call.1} parent=1 // pred_check_branch
      %1089 = sbr.rel (0) target = $region33
    $region32: #{tpu_custom_call.1} parent=1 // pred_region
      %1091 = vsyncadd [#allocation3], 0
      %s1093 = sshll.u32 [#allocation2], 4
      %s1094 = int_to_ptr.vmem [resolvable:$true] %s1093
      %s1095 = sshll.u32 %s7, 4
      %s1096 = int_to_ptr.hbm [resolvable:$true] %s1095
      %1098 = dma.vmem_to_hbm [thread:$0]  %s1094, 128, %s1096, [#allocation3]
    $region33: #{tpu_custom_call.1} parent=1 // pred_fallthru
      _
    // Predicated region
    $region34: #{tpu_custom_call.1} parent=1 // pred_check
      _
    $region35: #{tpu_custom_call.1} parent=1 // pred_check_branch
      %1100 = sbr.rel (0) target = $region37
    $region36: #{tpu_custom_call.1} parent=1 // pred_region
      %1102 = dma.done [#allocation3], 128
    $region37: #{tpu_custom_call.1} parent=1 // pred_fallthru
      _
    %1103 = vsyncpa [#allocation3], 1

</llo_original>
